<compile_context>
chip_gen: v5e
topology: v5e:2x2
jax: 0.10.0
libtpu: 0.0.40
codegen_flags: <defaults>
</compile_context>

<pallas_src>
import jax
import jax.numpy as jnp
from jax.experimental import pallas as pl
from jax.experimental.pallas import tpu as pltpu


def _round_up(x, m):
    return ((x + m - 1) // m) * m


def valuenet_kernel(x_ref,
                    w0_ref, b0_ref,
                    w1_ref, b1_ref,
                    w2_ref, b2_ref,
                    w3_ref, b3_ref,
                    w4_ref, b4_ref,
                    out_ref):
    """Feature-major MLP: activations are (features, batch_tile), batch on lanes."""

    def layer(h_bf16, w_ref, b_ref):
        # MXU: bf16 x bf16 -> f32 accumulate; bias add in f32 on the VPU.
        z = jnp.dot(w_ref[...], h_bf16, preferred_element_type=jnp.float32)
        return z + b_ref[...]                       # (out, TB) f32

    h = x_ref[...]                                  # (n_input, TB) bf16
    h = jnp.tanh(layer(h, w0_ref, b0_ref)).astype(jnp.bfloat16)
    h = jnp.tanh(layer(h, w1_ref, b1_ref)).astype(jnp.bfloat16)
    h = jnp.tanh(layer(h, w2_ref, b2_ref)).astype(jnp.bfloat16)
    h = jnp.tanh(layer(h, w3_ref, b3_ref)).astype(jnp.bfloat16)
    out = layer(h, w4_ref, b4_ref)                  # (1, TB) f32, no activation
    out_ref[...] = out.astype(out_ref.dtype)


def value_net_forward(x, params, *, batch_tile=1024):
    """x: (B, n_input) f32.  params: list of (W, b) in torch shapes W=(out, in), b=(out,)."""
    B, n_input = x.shape

    # Lane-dense batch tile (multiple of 128); capped so double-buffered x/out tiles
    # stay far under the scoped-VMEM default on every generation (incl. v7x 64 MiB).
    TB = min(batch_tile, max(128, _round_up(B, 128)))
    B_pad = _round_up(B, TB)
    grid = (B_pad // TB,)

    # Feature-major activations: (n_input, B_pad), batch on lanes; zero-pad extra columns.
    xT = jnp.zeros((n_input, B_pad), jnp.bfloat16).at[:, :B].set(x.T.astype(jnp.bfloat16))

    flat = []
    in_specs = [pl.BlockSpec((n_input, TB), lambda i: (0, i))]
    for (W, b) in params:
        Wb = W.astype(jnp.bfloat16)                 # (out, in) bf16 for the MXU
        bb = b.reshape(-1, 1).astype(jnp.float32)   # (out, 1) f32, broadcasts over lanes
        flat += [Wb, bb]
        # Weights/biases resident in VMEM across all batch tiles.
        in_specs += [pl.BlockSpec(Wb.shape, lambda i: (0, 0)),
                     pl.BlockSpec(bb.shape, lambda i: (0, 0))]

    n_hidden = params[0][0].shape[0]
    flops = 2 * B_pad * (n_input * n_hidden + 3 * n_hidden * n_hidden + n_hidden)
    bytes_accessed = (xT.size * 2 + B_pad * 4
                      + sum(w.size * 2 + bias.size * 4 for w, bias in params))

    outT = pl.pallas_call(
        valuenet_kernel,
        out_shape=jax.ShapeDtypeStruct((1, B_pad), jnp.float32),
        grid=grid,
        in_specs=in_specs,
        out_specs=pl.BlockSpec((1, TB), lambda i: (0, i)),
        compiler_params=pltpu.CompilerParams(
            dimension_semantics=("parallel",)),
        cost_estimate=pl.CostEstimate(
            flops=flops,
            transcendentals=4 * n_hidden * B_pad,
            bytes_accessed=bytes_accessed),
    )(xT, *flat)

    return outT[:, :B].T                            # (B, 1)


def init_params(key, n_input, n_hidden, n_output=1):
    """Deterministic PyTorch-style init: U(-1/sqrt(fan_in), 1/sqrt(fan_in)), torch shapes."""
    dims = [(n_input, n_hidden),
            (n_hidden, n_hidden),
            (n_hidden, n_hidden),
            (n_hidden, n_hidden),
            (n_hidden, n_output)]
    params = []
    for (fan_in, fan_out) in dims:
        key, kw, kb = jax.random.split(key, 3)
        bound = 1.0 / jnp.sqrt(fan_in)
        W = jax.random.uniform(kw, (fan_out, fan_in), jnp.float32, -bound, bound)  # (out, in)
        b = jax.random.uniform(kb, (fan_out,), jnp.float32, -bound, bound)
        params.append((W, b))
    return params


def value_net_reference(x, params):
    h = x
    for i, (W, b) in enumerate(params):
        h = h @ W.T + b
        if i < len(params) - 1:
            h = jnp.tanh(h)
    return h


if __name__ == "__main__":
    B, n_input, n_hidden = 8, 16, 32
    key = jax.random.PRNGKey(0)
    key, kx = jax.random.split(key)
    x = jax.random.normal(kx, (B, n_input), jnp.float32)
    params = init_params(key, n_input, n_hidden, n_output=1)

    fwd = jax.jit(value_net_forward)
    out = jax.block_until_ready(fwd(x, params))

    ref = value_net_reference(x, params)
    assert out.shape == (B, 1)
    # bf16 MXU inputs with f32 accumulation -> relaxed tolerance vs the f32 reference.
    assert jnp.allclose(out, ref, atol=2e-2, rtol=2e-2), "mismatch vs reference"

    print("KERNEL_OK")
</pallas_src>

<mosaic_0001>
module attributes {stable_mosaic.version = 11 : i64} {
  func.func @valuenet_kernel(%arg0: i32, %arg1: memref<16x128xbf16, #tpu.memory_space<vmem>>, %arg2: memref<32x16xbf16, #tpu.memory_space<vmem>>, %arg3: memref<32x1xf32, #tpu.memory_space<vmem>>, %arg4: memref<32x32xbf16, #tpu.memory_space<vmem>>, %arg5: memref<32x1xf32, #tpu.memory_space<vmem>>, %arg6: memref<32x32xbf16, #tpu.memory_space<vmem>>, %arg7: memref<32x1xf32, #tpu.memory_space<vmem>>, %arg8: memref<32x32xbf16, #tpu.memory_space<vmem>>, %arg9: memref<32x1xf32, #tpu.memory_space<vmem>>, %arg10: memref<1x32xbf16, #tpu.memory_space<vmem>>, %arg11: memref<1x1xf32, #tpu.memory_space<vmem>>, %arg12: memref<1x128xf32, #tpu.memory_space<vmem>>) attributes {dimension_semantics = [#tpu.dimension_semantics<parallel>], iteration_bounds = array<i64: 1>, scalar_prefetch = 0 : i64, scratch_operands = 0 : i64, tpu.core_type = #tpu.core_type<tc>, window_params = [{transform_indices = @transform_0, window_bounds = array<i64: 16, 128>}, {pipeline_mode = #tpu.pipeline_mode<synchronous>, transform_indices = @transform_1, window_bounds = array<i64: 32, 16>}, {pipeline_mode = #tpu.pipeline_mode<synchronous>, transform_indices = @transform_2, window_bounds = array<i64: 32, 1>}, {pipeline_mode = #tpu.pipeline_mode<synchronous>, transform_indices = @transform_3, window_bounds = array<i64: 32, 32>}, {pipeline_mode = #tpu.pipeline_mode<synchronous>, transform_indices = @transform_4, window_bounds = array<i64: 32, 1>}, {pipeline_mode = #tpu.pipeline_mode<synchronous>, transform_indices = @transform_5, window_bounds = array<i64: 32, 32>}, {pipeline_mode = #tpu.pipeline_mode<synchronous>, transform_indices = @transform_6, window_bounds = array<i64: 32, 1>}, {pipeline_mode = #tpu.pipeline_mode<synchronous>, transform_indices = @transform_7, window_bounds = array<i64: 32, 32>}, {pipeline_mode = #tpu.pipeline_mode<synchronous>, transform_indices = @transform_8, window_bounds = array<i64: 32, 1>}, {pipeline_mode = #tpu.pipeline_mode<synchronous>, transform_indices = @transform_9, window_bounds = array<i64: 1, 32>}, {pipeline_mode = #tpu.pipeline_mode<synchronous>, transform_indices = @transform_10, window_bounds = array<i64: 1, 1>}, {transform_indices = @transform_11, window_bounds = array<i64: 1, 128>}]} {
    %c0 = arith.constant 0 : index
    %c0_0 = arith.constant 0 : index
    %0 = vector.load %arg1[%c0, %c0_0] : memref<16x128xbf16, #tpu.memory_space<vmem>>, vector<16x128xbf16>
    %c0_1 = arith.constant 0 : index
    %c0_2 = arith.constant 0 : index
    %1 = vector.load %arg2[%c0_1, %c0_2] : memref<32x16xbf16, #tpu.memory_space<vmem>>, vector<32x16xbf16>
    %cst = arith.constant dense<0.000000e+00> : vector<32x128xf32>
    %2 = tpu.matmul %1, %0, %cst {dimension_numbers = #tpu.dot_dimension_numbers<[1], [0], [0], [1], [0, 0, 1, 1], [], []>} : vector<32x16xbf16>, vector<16x128xbf16>, vector<32x128xf32> -> vector<32x128xf32>
    %c0_3 = arith.constant 0 : index
    %c0_4 = arith.constant 0 : index
    %3 = vector.load %arg3[%c0_3, %c0_4] : memref<32x1xf32, #tpu.memory_space<vmem>>, vector<32x1xf32>
    %4 = vector.broadcast %3 : vector<32x1xf32> to vector<32x128xf32>
    %5 = arith.addf %2, %4 : vector<32x128xf32>
    %6 = math.tanh %5 : vector<32x128xf32>
    %7 = arith.truncf %6 : vector<32x128xf32> to vector<32x128xbf16>
    %c0_5 = arith.constant 0 : index
    %c0_6 = arith.constant 0 : index
    %8 = vector.load %arg4[%c0_5, %c0_6] : memref<32x32xbf16, #tpu.memory_space<vmem>>, vector<32x32xbf16>
    %cst_7 = arith.constant dense<0.000000e+00> : vector<32x128xf32>
    %9 = tpu.matmul %8, %7, %cst_7 {dimension_numbers = #tpu.dot_dimension_numbers<[1], [0], [0], [1], [0, 0, 1, 1], [], []>} : vector<32x32xbf16>, vector<32x128xbf16>, vector<32x128xf32> -> vector<32x128xf32>
    %c0_8 = arith.constant 0 : index
    %c0_9 = arith.constant 0 : index
    %10 = vector.load %arg5[%c0_8, %c0_9] : memref<32x1xf32, #tpu.memory_space<vmem>>, vector<32x1xf32>
    %11 = vector.broadcast %10 : vector<32x1xf32> to vector<32x128xf32>
    %12 = arith.addf %9, %11 : vector<32x128xf32>
    %13 = math.tanh %12 : vector<32x128xf32>
    %14 = arith.truncf %13 : vector<32x128xf32> to vector<32x128xbf16>
    %c0_10 = arith.constant 0 : index
    %c0_11 = arith.constant 0 : index
    %15 = vector.load %arg6[%c0_10, %c0_11] : memref<32x32xbf16, #tpu.memory_space<vmem>>, vector<32x32xbf16>
    %cst_12 = arith.constant dense<0.000000e+00> : vector<32x128xf32>
    %16 = tpu.matmul %15, %14, %cst_12 {dimension_numbers = #tpu.dot_dimension_numbers<[1], [0], [0], [1], [0, 0, 1, 1], [], []>} : vector<32x32xbf16>, vector<32x128xbf16>, vector<32x128xf32> -> vector<32x128xf32>
    %c0_13 = arith.constant 0 : index
    %c0_14 = arith.constant 0 : index
    %17 = vector.load %arg7[%c0_13, %c0_14] : memref<32x1xf32, #tpu.memory_space<vmem>>, vector<32x1xf32>
    %18 = vector.broadcast %17 : vector<32x1xf32> to vector<32x128xf32>
    %19 = arith.addf %16, %18 : vector<32x128xf32>
    %20 = math.tanh %19 : vector<32x128xf32>
    %21 = arith.truncf %20 : vector<32x128xf32> to vector<32x128xbf16>
    %c0_15 = arith.constant 0 : index
    %c0_16 = arith.constant 0 : index
    %22 = vector.load %arg8[%c0_15, %c0_16] : memref<32x32xbf16, #tpu.memory_space<vmem>>, vector<32x32xbf16>
    %cst_17 = arith.constant dense<0.000000e+00> : vector<32x128xf32>
    %23 = tpu.matmul %22, %21, %cst_17 {dimension_numbers = #tpu.dot_dimension_numbers<[1], [0], [0], [1], [0, 0, 1, 1], [], []>} : vector<32x32xbf16>, vector<32x128xbf16>, vector<32x128xf32> -> vector<32x128xf32>
    %c0_18 = arith.constant 0 : index
    %c0_19 = arith.constant 0 : index
    %24 = vector.load %arg9[%c0_18, %c0_19] : memref<32x1xf32, #tpu.memory_space<vmem>>, vector<32x1xf32>
    %25 = vector.broadcast %24 : vector<32x1xf32> to vector<32x128xf32>
    %26 = arith.addf %23, %25 : vector<32x128xf32>
    %27 = math.tanh %26 : vector<32x128xf32>
    %28 = arith.truncf %27 : vector<32x128xf32> to vector<32x128xbf16>
    %c0_20 = arith.constant 0 : index
    %c0_21 = arith.constant 0 : index
    %29 = vector.load %arg10[%c0_20, %c0_21] : memref<1x32xbf16, #tpu.memory_space<vmem>>, vector<1x32xbf16>
    %cst_22 = arith.constant dense<0.000000e+00> : vector<1x128xf32>
    %30 = tpu.matmul %29, %28, %cst_22 {dimension_numbers = #tpu.dot_dimension_numbers<[1], [0], [0], [1], [0, 0, 1, 1], [], []>} : vector<1x32xbf16>, vector<32x128xbf16>, vector<1x128xf32> -> vector<1x128xf32>
    %c0_23 = arith.constant 0 : index
    %c0_24 = arith.constant 0 : index
    %31 = vector.load %arg11[%c0_23, %c0_24] : memref<1x1xf32, #tpu.memory_space<vmem>>, vector<1x1xf32>
    %32 = vector.broadcast %31 : vector<1x1xf32> to vector<1x128xf32>
    %33 = arith.addf %30, %32 : vector<1x128xf32>
    %c0_25 = arith.constant 0 : index
    %c0_26 = arith.constant 0 : index
    %34 = vector.load %arg12[%c0_25, %c0_26] : memref<1x128xf32, #tpu.memory_space<vmem>>, vector<1x128xf32>
    tpu.vector_store %arg12[%c0_25, %c0_26], %33 {strides = array<i32>} : memref<1x128xf32, #tpu.memory_space<vmem>>, vector<1x128xf32>,
    return
  }
  func.func @transform_0(%arg0: i32) -> (i32, i32) {
    %c0_i32 = arith.constant 0 : i32
    %c0_i32_0 = arith.constant 0 : i32
    return %c0_i32, %arg0 : i32, i32
  }
  func.func @transform_1(%arg0: i32) -> (i32, i32) {
    %c0_i32 = arith.constant 0 : i32
    %c0_i32_0 = arith.constant 0 : i32
    %c0_i32_1 = arith.constant 0 : i32
    return %c0_i32, %c0_i32_0 : i32, i32
  }
  func.func @transform_2(%arg0: i32) -> (i32, i32) {
    %c0_i32 = arith.constant 0 : i32
    %c0_i32_0 = arith.constant 0 : i32
    %c0_i32_1 = arith.constant 0 : i32
    return %c0_i32, %c0_i32_0 : i32, i32
  }
  func.func @transform_3(%arg0: i32) -> (i32, i32) {
    %c0_i32 = arith.constant 0 : i32
    %c0_i32_0 = arith.constant 0 : i32
    %c0_i32_1 = arith.constant 0 : i32
    return %c0_i32, %c0_i32_0 : i32, i32
  }
  func.func @transform_4(%arg0: i32) -> (i32, i32) {
    %c0_i32 = arith.constant 0 : i32
    %c0_i32_0 = arith.constant 0 : i32
    %c0_i32_1 = arith.constant 0 : i32
    return %c0_i32, %c0_i32_0 : i32, i32
  }
  func.func @transform_5(%arg0: i32) -> (i32, i32) {
    %c0_i32 = arith.constant 0 : i32
    %c0_i32_0 = arith.constant 0 : i32
    %c0_i32_1 = arith.constant 0 : i32
    return %c0_i32, %c0_i32_0 : i32, i32
  }
  func.func @transform_6(%arg0: i32) -> (i32, i32) {
    %c0_i32 = arith.constant 0 : i32
    %c0_i32_0 = arith.constant 0 : i32
    %c0_i32_1 = arith.constant 0 : i32
    return %c0_i32, %c0_i32_0 : i32, i32
  }
  func.func @transform_7(%arg0: i32) -> (i32, i32) {
    %c0_i32 = arith.constant 0 : i32
    %c0_i32_0 = arith.constant 0 : i32
    %c0_i32_1 = arith.constant 0 : i32
    return %c0_i32, %c0_i32_0 : i32, i32
  }
  func.func @transform_8(%arg0: i32) -> (i32, i32) {
    %c0_i32 = arith.constant 0 : i32
    %c0_i32_0 = arith.constant 0 : i32
    %c0_i32_1 = arith.constant 0 : i32
    return %c0_i32, %c0_i32_0 : i32, i32
  }
  func.func @transform_9(%arg0: i32) -> (i32, i32) {
    %c0_i32 = arith.constant 0 : i32
    %c0_i32_0 = arith.constant 0 : i32
    %c0_i32_1 = arith.constant 0 : i32
    return %c0_i32, %c0_i32_0 : i32, i32
  }
  func.func @transform_10(%arg0: i32) -> (i32, i32) {
    %c0_i32 = arith.constant 0 : i32
    %c0_i32_0 = arith.constant 0 : i32
    %c0_i32_1 = arith.constant 0 : i32
    return %c0_i32, %c0_i32_0 : i32, i32
  }
  func.func @transform_11(%arg0: i32) -> (i32, i32) {
    %c0_i32 = arith.constant 0 : i32
    %c0_i32_0 = arith.constant 0 : i32
    return %c0_i32, %arg0 : i32, i32
  }
}

</mosaic_0001>

<llo_original>
// kernel: value_net_forward.1
$region0: #{value_net_forward.1}
  #allocation0 [shape = 'u32[]', space=smem, size = 0x4, offset = 0x4, fixed_abs, tag = 'smem constant byte address 0x4 - core index']
  #allocation1 [shape = 'u32[72,128]{1,0:T(1,128)}', space=vmem, size = 0x9000, scoped, tag = 'internal scratch']
  #allocation2 [shape = 'f32[1,1]{1,0:T(1,128)S(1)}', space=vmem, size = 0x200, scoped, tag = 'scoped memory for value_net_forward.1']
  %s0 = inlined_call_operand.vmem [shape: bf16[16,128], index: 0, kind: input, shape index: {}]
  %s1 = inlined_call_operand.vmem [shape: bf16[32,16], index: 1, kind: input, shape index: {}]
  %s2 = inlined_call_operand.vmem [shape: f32[32,1], index: 2, kind: input, shape index: {}]
  %s3 = inlined_call_operand.vmem [shape: bf16[32,32], index: 3, kind: input, shape index: {}]
  %s4 = inlined_call_operand.vmem [shape: f32[32,1], index: 4, kind: input, shape index: {}]
  %s5 = inlined_call_operand.vmem [shape: bf16[32,32], index: 5, kind: input, shape index: {}]
  %s6 = inlined_call_operand.vmem [shape: f32[32,1], index: 6, kind: input, shape index: {}]
  %s7 = inlined_call_operand.vmem [shape: bf16[32,32], index: 7, kind: input, shape index: {}]
  %s8 = inlined_call_operand.vmem [shape: f32[32,1], index: 8, kind: input, shape index: {}]
  %s9 = inlined_call_operand.vmem [shape: bf16[1,32], index: 9, kind: input, shape index: {}]
  %s10 = inlined_call_operand.<no memory space> [shape: f32[1,1], index: 10, kind: input, shape index: {}]
  %s11 = inlined_call_operand.vmem [shape: f32[1,128], index: 11, kind: output, shape index: {}]
  %s12 = sld [smem:[#allocation0]]
  $region54: #{value_net_forward.1} parent=0
    _
  %s14 = ssub.s32 1, %s12
  %s15 = scalar_select 0, %s14, %s12
  %v16 = vstv %s10
  %17 = vst [vmem:[#allocation2] sm:$0x1] %v16
  // Predicated region
  $region2: #{value_net_forward.1} parent=0 // pred_check
    _
  $region3: #{value_net_forward.1} parent=0 // pred_check_branch
    %19 = sbr.rel (0) target = $region5
  $region4: #{value_net_forward.1} parent=0 // pred_region
    _
  $region5: #{value_net_forward.1} parent=0 // pred_fallthru
    _
  // Predicated region
  $region6: #{value_net_forward.1} parent=0 // pred_check
    _
  $region7: #{value_net_forward.1} parent=0 // pred_check_branch
    %21 = sbr.rel (0) target = $region9
  $region8: #{value_net_forward.1} parent=0 // pred_region
    _
  $region9: #{value_net_forward.1} parent=0 // pred_fallthru
    _
  // Predicated region
  $region10: #{value_net_forward.1} parent=0 // pred_check
    _
  $region11: #{value_net_forward.1} parent=0 // pred_check_branch
    %23 = sbr.rel (0) target = $region13
  $region12: #{value_net_forward.1} parent=0 // pred_region
    _
  $region13: #{value_net_forward.1} parent=0 // pred_fallthru
    _
  // Predicated region
  $region14: #{value_net_forward.1} parent=0 // pred_check
    _
  $region15: #{value_net_forward.1} parent=0 // pred_check_branch
    %25 = sbr.rel (0) target = $region17
  $region16: #{value_net_forward.1} parent=0 // pred_region
    _
  $region17: #{value_net_forward.1} parent=0 // pred_fallthru
    _
  // Predicated region
  $region18: #{value_net_forward.1} parent=0 // pred_check
    _
  $region19: #{value_net_forward.1} parent=0 // pred_check_branch
    %27 = sbr.rel (0) target = $region21
  $region20: #{value_net_forward.1} parent=0 // pred_region
    _
  $region21: #{value_net_forward.1} parent=0 // pred_fallthru
    _
  // Predicated region
  $region22: #{value_net_forward.1} parent=0 // pred_check
    _
  $region23: #{value_net_forward.1} parent=0 // pred_check_branch
    %29 = sbr.rel (0) target = $region25
  $region24: #{value_net_forward.1} parent=0 // pred_region
    _
  $region25: #{value_net_forward.1} parent=0 // pred_fallthru
    _
  // Predicated region
  $region26: #{value_net_forward.1} parent=0 // pred_check
    _
  $region27: #{value_net_forward.1} parent=0 // pred_check_branch
    %31 = sbr.rel (0) target = $region29
  $region28: #{value_net_forward.1} parent=0 // pred_region
    _
  $region29: #{value_net_forward.1} parent=0 // pred_fallthru
    _
  // Predicated region
  $region30: #{value_net_forward.1} parent=0 // pred_check
    _
  $region31: #{value_net_forward.1} parent=0 // pred_check_branch
    %33 = sbr.rel (0) target = $region33
  $region32: #{value_net_forward.1} parent=0 // pred_region
    _
  $region33: #{value_net_forward.1} parent=0 // pred_fallthru
    _
  // Predicated region
  $region34: #{value_net_forward.1} parent=0 // pred_check
    _
  $region35: #{value_net_forward.1} parent=0 // pred_check_branch
    %35 = sbr.rel (0) target = $region37
  $region36: #{value_net_forward.1} parent=0 // pred_region
    _
  $region37: #{value_net_forward.1} parent=0 // pred_fallthru
    _
  // Predicated region
  $region38: #{value_net_forward.1} parent=0 // pred_check
    _
  $region39: #{value_net_forward.1} parent=0 // pred_check_branch
    %37 = sbr.rel (0) target = $region41
  $region40: #{value_net_forward.1} parent=0 // pred_region
    _
  $region41: #{value_net_forward.1} parent=0 // pred_fallthru
    _
  // Predicated region
  $region42: #{value_net_forward.1} parent=0 // pred_check
    _
  $region43: #{value_net_forward.1} parent=0 // pred_check_branch
    %39 = sbr.rel (0) target = $region45
  $region44: #{value_net_forward.1} parent=0 // pred_region
    _
  $region45: #{value_net_forward.1} parent=0 // pred_fallthru
    _
  %v41 = vld [vmem:[%s0] sm:$0xf]
  %v42 = vld [vmem:[%s0 + $0x4] sm:$0xf]
  %v43 = vld [vmem:[%s1] sm:$0xf]
  %v44 = vld [vmem:[%s1 + $0x4] sm:$0xf]
  %v45 = vld [vmem:[%s1 + $0x8] sm:$0xf]
  %v46 = vld [vmem:[%s1 + $0xc] sm:$0xf]
  %v47 = vld [vmem:[%s2] sm:$0xff]
  %v48 = vld [vmem:[%s2 + $0x8] sm:$0xff]
  %v49 = vld [vmem:[%s2 + $0x10] sm:$0xff]
  %v50 = vld [vmem:[%s2 + $0x18] sm:$0xff]
  %52 = vset.pattern.permute.xlu0 0
  %53 = vperm.xlu0 %52, %v47
  %v54 = vpop.permute.xlu0 %53
  %57 = vset.pattern.permute.xlu0 0
  %58 = vperm.xlu0 %57, %v48
  %v59 = vpop.permute.xlu0 %58
  %62 = vset.pattern.permute.xlu0 0
  %63 = vperm.xlu0 %62, %v49
  %v64 = vpop.permute.xlu0 %63
  %67 = vset.pattern.permute.xlu0 0
  %68 = vperm.xlu0 %67, %v50
  %v69 = vpop.permute.xlu0 %68
  %v75 = vunpack.c.l.b16 %v43
  %v76 = vunpack.c.l.b16 %v44
  %v77 = vunpack.c.l.b16 %v45
  %v78 = vunpack.c.l.b16 %v46
  %v79 = vpack.c.b16 %v76, %v75
  %v80 = vpack.c.b16 %v78, %v77
  %v83 = vunpack.c.l.b16 %v41
  %v84 = vunpack.c.l.b16 %v42
  %v85 = vpack.c.b16 %v84, %v83
  %vm87 = vcmask 130048
  %v89 = vsel %vm87, %v79, 0
  %v92 = vsel %vm87, %v80, 0
  %94 = vmatpush.bf16.msra.mxu0 0
  %95 = vmatpush.bf16.msra.mxu0 0
  %96 = vmatpush.bf16.msra.mxu0 0
  %97 = vmatpush.bf16.msra.mxu0 0
  %98 = vmatpush.bf16.msra.mxu0 0
  %99 = vmatpush.bf16.msra.mxu0 0
  %100 = vmatpush.bf16.msra.mxu0 0
  %101 = vmatpush.bf16.msra.mxu0 %v85
  %102 = vmatmul.bf16.gmra.mxu0 %v89
  %v103 = vpop.f32.mrf.mxu0
  %v104 = vadd.f32 %v54, %v103
  %v105 = vpop.f32.mrf.mxu0
  %v106 = vadd.f32 %v59, %v105
  %107 = vmatmul.bf16.gmra.mxu0 %v92
  %v108 = vpop.f32.mrf.mxu0
  %v109 = vadd.f32 %v64, %v108
  %v110 = vpop.f32.mrf.mxu0
  %v111 = vadd.f32 %v69, %v110
  %112 = vdwg.mxu0
  %v113 = vtanh.pop %v104
  %v114 = vtanh.pop %v106
  %v115 = vtanh.pop %v109
  %v116 = vtanh.pop %v111
  %v117 = vpack.c.bf16 %v114, %v113
  %v118 = vpack.c.bf16 %v116, %v115
  %v119 = vld [vmem:[%s3] sm:$0xf]
  %v120 = vld [vmem:[%s3 + $0x4] sm:$0xf]
  %v121 = vld [vmem:[%s3 + $0x8] sm:$0xf]
  %v122 = vld [vmem:[%s3 + $0xc] sm:$0xf]
  %v123 = vld [vmem:[%s4] sm:$0xff]
  %v124 = vld [vmem:[%s4 + $0x8] sm:$0xff]
  %v125 = vld [vmem:[%s4 + $0x10] sm:$0xff]
  %v126 = vld [vmem:[%s4 + $0x18] sm:$0xff]
  %128 = vset.pattern.permute.xlu0 0
  %129 = vperm.xlu0 %128, %v123
  %v130 = vpop.permute.xlu0 %129
  %133 = vset.pattern.permute.xlu0 0
  %134 = vperm.xlu0 %133, %v124
  %v135 = vpop.permute.xlu0 %134
  %138 = vset.pattern.permute.xlu0 0
  %139 = vperm.xlu0 %138, %v125
  %v140 = vpop.permute.xlu0 %139
  %143 = vset.pattern.permute.xlu0 0
  %144 = vperm.xlu0 %143, %v126
  %v145 = vpop.permute.xlu0 %144
  %v151 = vunpack.c.l.b16 %v119
  %v152 = vunpack.c.l.b16 %v120
  %v153 = vunpack.c.l.b16 %v121
  %v154 = vunpack.c.l.b16 %v122
  %v155 = vpack.c.b16 %v152, %v151
  %v156 = vpack.c.b16 %v154, %v153
  %vm157 = vcmask 261120
  %v159 = vsel %vm157, %v155, 0
  %v162 = vsel %vm157, %v156, 0
  %164 = vmatpush.bf16.msra.mxu0 0
  %165 = vmatpush.bf16.msra.mxu0 0
  %166 = vmatpush.bf16.msra.mxu0 0
  %167 = vmatpush.bf16.msra.mxu0 0
  %168 = vmatpush.bf16.msra.mxu0 0
  %169 = vmatpush.bf16.msra.mxu0 0
  %170 = vmatpush.bf16.msra.mxu0 %v118
  %171 = vmatpush.bf16.msra.mxu0 %v117
  %172 = vmatmul.bf16.gmra.mxu0 %v159
  %v173 = vpop.f32.mrf.mxu0
  %v174 = vadd.f32 %v130, %v173
  %v175 = vpop.f32.mrf.mxu0
  %v176 = vadd.f32 %v135, %v175
  %177 = vmatmul.bf16.gmra.mxu0 %v162
  %v178 = vpop.f32.mrf.mxu0
  %v179 = vadd.f32 %v140, %v178
  %v180 = vpop.f32.mrf.mxu0
  %v181 = vadd.f32 %v145, %v180
  %182 = vdwg.mxu0
  %v183 = vtanh.pop %v174
  %v184 = vtanh.pop %v176
  %v185 = vtanh.pop %v179
  %v186 = vtanh.pop %v181
  %v187 = vpack.c.bf16 %v184, %v183
  %v188 = vpack.c.bf16 %v186, %v185
  %v189 = vld [vmem:[%s5] sm:$0xf]
  %v190 = vld [vmem:[%s5 + $0x4] sm:$0xf]
  %v191 = vld [vmem:[%s5 + $0x8] sm:$0xf]
  %v192 = vld [vmem:[%s5 + $0xc] sm:$0xf]
  %v193 = vld [vmem:[%s6] sm:$0xff]
  %v194 = vld [vmem:[%s6 + $0x8] sm:$0xff]
  %v195 = vld [vmem:[%s6 + $0x10] sm:$0xff]
  %v196 = vld [vmem:[%s6 + $0x18] sm:$0xff]
  %198 = vset.pattern.permute.xlu0 0
  %199 = vperm.xlu0 %198, %v193
  %v200 = vpop.permute.xlu0 %199
  %203 = vset.pattern.permute.xlu0 0
  %204 = vperm.xlu0 %203, %v194
  %v205 = vpop.permute.xlu0 %204
  %208 = vset.pattern.permute.xlu0 0
  %209 = vperm.xlu0 %208, %v195
  %v210 = vpop.permute.xlu0 %209
  %213 = vset.pattern.permute.xlu0 0
  %214 = vperm.xlu0 %213, %v196
  %v215 = vpop.permute.xlu0 %214
  %v221 = vunpack.c.l.b16 %v189
  %v222 = vunpack.c.l.b16 %v190
  %v223 = vunpack.c.l.b16 %v191
  %v224 = vunpack.c.l.b16 %v192
  %v225 = vpack.c.b16 %v222, %v221
  %v226 = vpack.c.b16 %v224, %v223
  %v228 = vsel %vm157, %v225, 0
  %v231 = vsel %vm157, %v226, 0
  %233 = vmatpush.bf16.msra.mxu0 0
  %234 = vmatpush.bf16.msra.mxu0 0
  %235 = vmatpush.bf16.msra.mxu0 0
  %236 = vmatpush.bf16.msra.mxu0 0
  %237 = vmatpush.bf16.msra.mxu0 0
  %238 = vmatpush.bf16.msra.mxu0 0
  %239 = vmatpush.bf16.msra.mxu0 %v188
  %240 = vmatpush.bf16.msra.mxu0 %v187
  %241 = vmatmul.bf16.gmra.mxu0 %v228
  %v242 = vpop.f32.mrf.mxu0
  %v243 = vadd.f32 %v200, %v242
  %v244 = vpop.f32.mrf.mxu0
  %v245 = vadd.f32 %v205, %v244
  %246 = vmatmul.bf16.gmra.mxu0 %v231
  %v247 = vpop.f32.mrf.mxu0
  %v248 = vadd.f32 %v210, %v247
  %v249 = vpop.f32.mrf.mxu0
  %v250 = vadd.f32 %v215, %v249
  %251 = vdwg.mxu0
  %v252 = vtanh.pop %v243
  %v253 = vtanh.pop %v245
  %v254 = vtanh.pop %v248
  %v255 = vtanh.pop %v250
  %v256 = vpack.c.bf16 %v253, %v252
  %v257 = vpack.c.bf16 %v255, %v254
  %v258 = vld [vmem:[%s7] sm:$0xf]
  %v259 = vld [vmem:[%s7 + $0x4] sm:$0xf]
  %v260 = vld [vmem:[%s7 + $0x8] sm:$0xf]
  %v261 = vld [vmem:[%s7 + $0xc] sm:$0xf]
  %v262 = vld [vmem:[%s8] sm:$0xff]
  %v263 = vld [vmem:[%s8 + $0x8] sm:$0xff]
  %v264 = vld [vmem:[%s8 + $0x10] sm:$0xff]
  %v265 = vld [vmem:[%s8 + $0x18] sm:$0xff]
  %267 = vset.pattern.permute.xlu0 0
  %268 = vperm.xlu0 %267, %v262
  %v269 = vpop.permute.xlu0 %268
  %272 = vset.pattern.permute.xlu0 0
  %273 = vperm.xlu0 %272, %v263
  %v274 = vpop.permute.xlu0 %273
  %277 = vset.pattern.permute.xlu0 0
  %278 = vperm.xlu0 %277, %v264
  %v279 = vpop.permute.xlu0 %278
  %282 = vset.pattern.permute.xlu0 0
  %283 = vperm.xlu0 %282, %v265
  %v284 = vpop.permute.xlu0 %283
  %v290 = vunpack.c.l.b16 %v258
  %v291 = vunpack.c.l.b16 %v259
  %v292 = vunpack.c.l.b16 %v260
  %v293 = vunpack.c.l.b16 %v261
  %v294 = vpack.c.b16 %v291, %v290
  %v295 = vpack.c.b16 %v293, %v292
  %v297 = vsel %vm157, %v294, 0
  %v300 = vsel %vm157, %v295, 0
  %302 = vmatpush.bf16.msra.mxu0 0
  %303 = vmatpush.bf16.msra.mxu0 0
  %304 = vmatpush.bf16.msra.mxu0 0
  %305 = vmatpush.bf16.msra.mxu0 0
  %306 = vmatpush.bf16.msra.mxu0 0
  %307 = vmatpush.bf16.msra.mxu0 0
  %308 = vmatpush.bf16.msra.mxu0 %v257
  %309 = vmatpush.bf16.msra.mxu0 %v256
  %310 = vmatmul.bf16.gmra.mxu0 %v297
  %v311 = vpop.f32.mrf.mxu0
  %v312 = vadd.f32 %v269, %v311
  %v313 = vpop.f32.mrf.mxu0
  %v314 = vadd.f32 %v274, %v313
  %315 = vmatmul.bf16.gmra.mxu0 %v300
  %v316 = vpop.f32.mrf.mxu0
  %v317 = vadd.f32 %v279, %v316
  %v318 = vpop.f32.mrf.mxu0
  %v319 = vadd.f32 %v284, %v318
  %320 = vdwg.mxu0
  %v321 = vtanh.pop %v312
  %v322 = vtanh.pop %v314
  %v323 = vtanh.pop %v317
  %v324 = vtanh.pop %v319
  %v325 = vpack.c.bf16 %v322, %v321
  %v326 = vpack.c.bf16 %v324, %v323
  %v327 = vld [vmem:[%s9] sm:$0x1]
  %v328 = vld [vmem:[#allocation2] sm:$0x1]
  %330 = vset.pattern.permute.xlu0 0
  %331 = vperm.xlu0 %330, %v328
  %v332 = vpop.permute.xlu0 %331
  %v334 = vperm.slane %v332, 0
  %v336 = vsel %vm157, %v327, 0
  %338 = vmatpush.bf16.msra.mxu0 0
  %339 = vmatpush.bf16.msra.mxu0 0
  %340 = vmatpush.bf16.msra.mxu0 0
  %341 = vmatpush.bf16.msra.mxu0 0
  %342 = vmatpush.bf16.msra.mxu0 0
  %343 = vmatpush.bf16.msra.mxu0 0
  %344 = vmatpush.bf16.msra.mxu0 %v326
  %345 = vmatpush.bf16.msra.mxu0 %v325
  %346 = vmatmul.bf16.gmra.mxu0 %v336
  %v347 = vpop.f32.mrf.mxu0
  %v348 = vadd.f32 %v334, %v347
  %v349 = vpop.f32.mrf.mxu0
  %350 = vdwg.mxu0
  %351 = vst [vmem:[%s11] sm:$0x1] %v348
  // Predicated region
  $region46: #{value_net_forward.1} parent=0 // pred_check
    _
  $region47: #{value_net_forward.1} parent=0 // pred_check_branch
    %353 = sbr.rel (0) target = $region49
  $region48: #{value_net_forward.1} parent=0 // pred_region
    _
  $region49: #{value_net_forward.1} parent=0 // pred_fallthru
    _
  // Predicated region
  $region50: #{value_net_forward.1} parent=0 // pred_check
    _
  $region51: #{value_net_forward.1} parent=0 // pred_check_branch
    %355 = sbr.rel (0) target = $region53
  $region52: #{value_net_forward.1} parent=0 // pred_region
    _
  $region53: #{value_net_forward.1} parent=0 // pred_fallthru
    _

</llo_original>
